<compile_context>
chip_gen: v6e
topology: v6e:2x2x1
jax: 0.10.0
libtpu: 0.0.40
codegen_flags: <defaults>
</compile_context>

<pallas_src>
import jax
import jax.numpy as jnp
from jax.experimental import pallas as pl
from jax.experimental.pallas import tpu as pltpu

LN_EPS = 1e-5


def _round_up(x, m):
    return (x + m - 1) // m * m


def critic_kernel(sp_ref, act_ref,
                  w1_ref, ln_ref,
                  w2x_ref, w2a_ref, b2_ref,
                  w5_ref, b5_ref,
                  out_ref):
    # Activations arrive feature-major, batch in lanes, bf16.
    sp = sp_ref[...]       # (2S, TB) bf16  rows [0:S]=state, [S:2S]=prev_state
    act = act_ref[...]     # (A,  TB) bf16

    # fcs1 over cat(pred_state, state); pred = state - prev and the concat are
    # pre-folded into W_cat = [W1p+W1s | -W1p], so this is one K=2S matmul.
    ln = ln_ref[...]                                       # (FCS1, 3) f32
    h = (jnp.dot(w1_ref[...], sp, preferred_element_type=jnp.float32)
         + ln[:, 0:1])                                     # (FCS1, TB) f32

    # LayerNorm over the feature (sublane) axis, two-pass statistics
    # (centered variance: same cost as one-pass here, no f32 cancellation).
    n = h.shape[0]
    mean = jnp.sum(h, axis=0, keepdims=True) * (1.0 / n)   # (1, TB)
    d = h - mean
    var = jnp.sum(d * d, axis=0, keepdims=True) * (1.0 / n)
    inv = jax.lax.rsqrt(var + LN_EPS)
    xs = (d * inv) * ln[:, 1:2] + ln[:, 2:3]               # gamma / beta
    xs = jnp.maximum(xs, 0.0).astype(jnp.bfloat16)         # ReLU -> bf16 for MXU

    # fc2 over cat(xs, action) as split-weight matmuls (concat-free).
    x = (jnp.dot(w2x_ref[...], xs, preferred_element_type=jnp.float32)
         + jnp.dot(w2a_ref[...], act, preferred_element_type=jnp.float32)
         + b2_ref[...])                                     # (FC2, TB) f32
    x = jnp.maximum(x, 0.0)

    # Dropout(0.2): eval-mode identity.
    # TODO(synk): training-mode dropout (stochastic masking) not implemented.

    # fc5 (out_features=1) on the MXU: (1, FC2) x (FC2, TB) -> lane-dense row.
    q = (jnp.dot(w5_ref[...], x.astype(jnp.bfloat16),
                 preferred_element_type=jnp.float32)
         + b5_ref[...])                                     # (1, TB) f32
    out_ref[...] = q.astype(out_ref.dtype)


def _pick_block_b(B):
    """Batch tile heuristic.

    Up to TARGET lanes per grid step (amortizes the ~0.35 us/step pipeline
    overhead; f32 intermediates stay a few MB, well under 32 MiB scoped VMEM
    on v5e/v6e/v7x).  Large batches are split into an even number of >=2
    steps so the "parallel" batch axis can shard across v7x's two
    TensorCores.  Sweep per chip if this kernel matters end-to-end.
    """
    TARGET = 4096
    b128 = _round_up(max(B, 1), 128)
    if b128 <= TARGET:
        return b128
    steps = 2 * (-(-b128 // (2 * TARGET)))          # even number of steps
    return _round_up(-(-b128 // steps), 128)


def critic_forward(prev_state, state, action, params, *, block_b=None):
    """Q = Critic(prev_state, state, action).  Returns (B, 1) float32."""
    B, S = state.shape
    A = action.shape[1]
    FCS1 = params["w1_cat"].shape[0]
    FC2 = params["w2x_t"].shape[0]

    if block_b is None:
        block_b = _pick_block_b(B)
    B_pad = _round_up(B, block_b)
    grid = (B_pad // block_b,)

    # Host-side prep: batch-major f32 -> feature-major bf16, one transpose for
    # the merged state/prev stream.  (Producers should ideally hand over
    # feature-major bf16 directly to skip this extra HBM pass.)
    def prep(x):  # (B, F) -> (F, B_pad) bf16
        x = jnp.transpose(x.astype(jnp.bfloat16))
        return jnp.pad(x, ((0, 0), (0, B_pad - B)))

    sp_fm = prep(jnp.concatenate([state, prev_state], axis=1))   # (2S, B_pad)
    act_fm = prep(action)                                        # (A,  B_pad)

    # Activation streams tile along the batch (lane) axis; weights/biases use
    # constant index_maps -> fetched once, VMEM-resident across all steps.
    def act_spec(rows):
        return pl.BlockSpec((rows, block_b), lambda i: (0, i))

    def w_spec(shape):
        return pl.BlockSpec(shape, lambda i: (0, 0))

    args = (sp_fm, act_fm,
            params["w1_cat"], params["ln_pack"],
            params["w2x_t"], params["w2a_t"], params["b2"],
            params["w5_row"], params["b5"])
    in_specs = [
        act_spec(2 * S), act_spec(A),
        w_spec((FCS1, 2 * S)), w_spec((FCS1, 3)),
        w_spec((FC2, FCS1)), w_spec((FC2, A)), w_spec((FC2, 1)),
        w_spec((1, FC2)), w_spec((1, 1)),
    ]

    flops = int(B_pad) * (4 * S * FCS1           # fcs1 (K = 2S)
                          + 2 * FCS1 * FC2 + 2 * A * FC2   # fc2
                          + 2 * FC2)             # fc5
    bytes_accessed = (2 * (2 * S + A) * B_pad                    # bf16 act in
                      + 4 * B_pad                                # f32 q out
                      + 2 * (2 * S * FCS1 + FC2 * (FCS1 + A) + FC2)  # bf16 W
                      + 4 * (3 * FCS1 + FC2 + 1))                # f32 params

    out = pl.pallas_call(
        critic_kernel,
        out_shape=jax.ShapeDtypeStruct((1, B_pad), jnp.float32),
        grid=grid,
        in_specs=in_specs,
        out_specs=pl.BlockSpec((1, block_b), lambda i: (0, i)),
        compiler_params=pltpu.CompilerParams(
            dimension_semantics=("parallel",),
            vmem_limit_bytes=32 * 1024 * 1024),
        cost_estimate=pl.CostEstimate(
            flops=flops, transcendentals=int(B_pad),
            bytes_accessed=int(bytes_accessed)),
    )(*args)

    return out[0, :B].reshape(B, 1)


def init_params(key, state_size, action_size, fcs1_units, fc2_units):
    """Shapes mirror the PyTorch module (pred_state_size == state_size, since
    pred_state = state - prev_state).  hidden_init in the original uses
    weight.size(0) == out_features as 'fan_in'; the same limits are
    reproduced.  Weights are stored pre-transposed (out, in), pre-folded for
    the merged stream, and small per-feature params are packed together."""
    k1, k2, k3, kb1, kb2, kb3 = jax.random.split(key, 6)
    in1 = 2 * state_size
    lim1 = fcs1_units ** -0.5
    lim2 = fc2_units ** -0.5
    lim5 = 0.003

    w1 = jax.random.uniform(k1, (in1, fcs1_units), jnp.float32, -lim1, lim1)
    w2 = jax.random.uniform(k2, (fcs1_units + action_size, fc2_units),
                            jnp.float32, -lim2, lim2)
    w5 = jax.random.uniform(k3, (fc2_units, 1), jnp.float32, -lim5, lim5)
    b1 = jax.random.uniform(kb1, (fcs1_units,), jnp.float32, -lim1, lim1)
    b2 = jax.random.uniform(kb2, (fc2_units,), jnp.float32, -lim2, lim2)
    b5 = jax.random.uniform(kb3, (1,), jnp.float32, -lim5, lim5)

    w1p = w1[:state_size, :]      # rows acting on pred_state
    w1s = w1[state_size:, :]      # rows acting on state

    # cat(state-prev, state) @ W1  ==  [state | prev] @ [W1p+W1s | -W1p]^T
    w1_cat = jnp.concatenate([jnp.transpose(w1p + w1s),
                              -jnp.transpose(w1p)], axis=1)       # (FCS1, 2S)

    ln_pack = jnp.stack([b1,
                         jnp.ones((fcs1_units,), jnp.float32),    # gamma
                         jnp.zeros((fcs1_units,), jnp.float32)],  # beta
                        axis=1)                                   # (FCS1, 3)

    return {
        "w1_cat": w1_cat.astype(jnp.bfloat16),                    # (FCS1, 2S)
        "ln_pack": ln_pack,                                       # (FCS1, 3)
        "w2x_t": jnp.transpose(w2[:fcs1_units, :]).astype(jnp.bfloat16),
        "w2a_t": jnp.transpose(w2[fcs1_units:, :]).astype(jnp.bfloat16),
        "b2": b2.reshape(fc2_units, 1),
        "w5_row": jnp.transpose(w5).astype(jnp.bfloat16),          # (1, FC2)
        "b5": b5.reshape(1, 1),
    }


def reference_forward(prev_state, state, action, params):
    """Pure-JAX reference with matching bf16 matmul operands for the check."""
    bf16 = jnp.bfloat16
    sp = jnp.concatenate([state, prev_state], axis=1).astype(bf16)  # (B, 2S)
    h = (jnp.dot(sp, params["w1_cat"].T.astype(bf16),
                 preferred_element_type=jnp.float32)
         + params["ln_pack"][:, 0])
    mean = jnp.mean(h, axis=-1, keepdims=True)
    var = jnp.mean((h - mean) ** 2, axis=-1, keepdims=True)
    xs = (h - mean) * jax.lax.rsqrt(var + LN_EPS)
    xs = xs * params["ln_pack"][:, 1] + params["ln_pack"][:, 2]
    xs = jnp.maximum(xs, 0.0)
    x = (jnp.dot(xs.astype(bf16), params["w2x_t"].T,
                 preferred_element_type=jnp.float32)
         + jnp.dot(action.astype(bf16), params["w2a_t"].T,
                   preferred_element_type=jnp.float32)
         + params["b2"].T)
    x = jnp.maximum(x, 0.0)
    return (jnp.dot(x.astype(bf16), params["w5_row"].T,
                    preferred_element_type=jnp.float32)
            + params["b5"])


if __name__ == "__main__":
    # Small shapes consistent with the module's forward.
    B = 4
    STATE = 8       # pred_state = state - prev_state  => same dim as state
    ACTION = 4
    FCS1 = 64
    FC2 = 32

    key = jax.random.PRNGKey(0)
    kp, ks, ka, kw = jax.random.split(key, 4)
    prev_state = jax.random.normal(kp, (B, STATE), jnp.float32)
    state = jax.random.normal(ks, (B, STATE), jnp.float32)
    action = jax.random.uniform(ka, (B, ACTION), jnp.float32, -1.0, 1.0)

    params = init_params(kw, STATE, ACTION, FCS1, FC2)

    q = critic_forward(prev_state, state, action, params)
    q = jax.block_until_ready(q)

    q_ref = reference_forward(prev_state, state, action, params)
    assert q.shape == (B, 1)
    assert jnp.allclose(q, q_ref, atol=2e-2, rtol=2e-2), (q, q_ref)

    print("KERNEL_OK")
</pallas_src>

<mosaic_0001>
module attributes {stable_mosaic.version = 11 : i64} {
  func.func @critic_kernel(%arg0: i32, %arg1: memref<16x128xbf16, #tpu.memory_space<vmem>>, %arg2: memref<4x128xbf16, #tpu.memory_space<vmem>>, %arg3: memref<64x16xbf16, #tpu.memory_space<vmem>>, %arg4: memref<64x3xf32, #tpu.memory_space<vmem>>, %arg5: memref<32x64xbf16, #tpu.memory_space<vmem>>, %arg6: memref<32x4xbf16, #tpu.memory_space<vmem>>, %arg7: memref<32x1xf32, #tpu.memory_space<vmem>>, %arg8: memref<1x32xbf16, #tpu.memory_space<vmem>>, %arg9: memref<1x1xf32, #tpu.memory_space<vmem>>, %arg10: memref<1x128xf32, #tpu.memory_space<vmem>>) attributes {dimension_semantics = [#tpu.dimension_semantics<parallel>], iteration_bounds = array<i64: 1>, scalar_prefetch = 0 : i64, scratch_operands = 0 : i64, tpu.core_type = #tpu.core_type<tc>, window_params = [{transform_indices = @transform_0, window_bounds = array<i64: 16, 128>}, {transform_indices = @transform_1, window_bounds = array<i64: 4, 128>}, {pipeline_mode = #tpu.pipeline_mode<synchronous>, transform_indices = @transform_2, window_bounds = array<i64: 64, 16>}, {pipeline_mode = #tpu.pipeline_mode<synchronous>, transform_indices = @transform_3, window_bounds = array<i64: 64, 3>}, {pipeline_mode = #tpu.pipeline_mode<synchronous>, transform_indices = @transform_4, window_bounds = array<i64: 32, 64>}, {pipeline_mode = #tpu.pipeline_mode<synchronous>, transform_indices = @transform_5, window_bounds = array<i64: 32, 4>}, {pipeline_mode = #tpu.pipeline_mode<synchronous>, transform_indices = @transform_6, window_bounds = array<i64: 32, 1>}, {pipeline_mode = #tpu.pipeline_mode<synchronous>, transform_indices = @transform_7, window_bounds = array<i64: 1, 32>}, {pipeline_mode = #tpu.pipeline_mode<synchronous>, transform_indices = @transform_8, window_bounds = array<i64: 1, 1>}, {transform_indices = @transform_9, window_bounds = array<i64: 1, 128>}]} {
    %c0 = arith.constant 0 : index
    %c0_0 = arith.constant 0 : index
    %0 = vector.load %arg1[%c0, %c0_0] : memref<16x128xbf16, #tpu.memory_space<vmem>>, vector<16x128xbf16>
    %c0_1 = arith.constant 0 : index
    %c0_2 = arith.constant 0 : index
    %1 = vector.load %arg2[%c0_1, %c0_2] : memref<4x128xbf16, #tpu.memory_space<vmem>>, vector<4x128xbf16>
    %c0_3 = arith.constant 0 : index
    %c0_4 = arith.constant 0 : index
    %2 = vector.load %arg4[%c0_3, %c0_4] : memref<64x3xf32, #tpu.memory_space<vmem>>, vector<64x3xf32>
    %c0_5 = arith.constant 0 : index
    %c0_6 = arith.constant 0 : index
    %3 = vector.load %arg3[%c0_5, %c0_6] : memref<64x16xbf16, #tpu.memory_space<vmem>>, vector<64x16xbf16>
    %cst = arith.constant dense<0.000000e+00> : vector<64x128xf32>
    %4 = tpu.matmul %3, %0, %cst {dimension_numbers = #tpu.dot_dimension_numbers<[1], [0], [0], [1], [0, 0, 1, 1], [], []>} : vector<64x16xbf16>, vector<16x128xbf16>, vector<64x128xf32> -> vector<64x128xf32>
    %5 = vector.extract_strided_slice %2 {offsets = [0, 0], sizes = [64, 1], strides = [1, 1]} : vector<64x3xf32> to vector<64x1xf32>
    %6 = vector.broadcast %5 : vector<64x1xf32> to vector<64x128xf32>
    %7 = arith.addf %4, %6 : vector<64x128xf32>
    %cst_7 = arith.constant dense<0.000000e+00> : vector<128xf32>
    %8 = vector.multi_reduction <add>, %7, %cst_7 [0] : vector<64x128xf32> to vector<128xf32>
    %9 = vector.shape_cast %8 : vector<128xf32> to vector<1x128xf32>
    %cst_8 = arith.constant 1.562500e-02 : f32
    %10 = vector.broadcast %cst_8 : f32 to vector<1x128xf32>
    %11 = arith.mulf %9, %10 : vector<1x128xf32>
    %12 = vector.broadcast %11 : vector<1x128xf32> to vector<64x128xf32>
    %13 = arith.subf %7, %12 : vector<64x128xf32>
    %14 = arith.mulf %13, %13 : vector<64x128xf32>
    %cst_9 = arith.constant dense<0.000000e+00> : vector<128xf32>
    %15 = vector.multi_reduction <add>, %14, %cst_9 [0] : vector<64x128xf32> to vector<128xf32>
    %16 = vector.shape_cast %15 : vector<128xf32> to vector<1x128xf32>
    %cst_10 = arith.constant 1.562500e-02 : f32
    %17 = vector.broadcast %cst_10 : f32 to vector<1x128xf32>
    %18 = arith.mulf %16, %17 : vector<1x128xf32>
    %cst_11 = arith.constant 9.99999974E-6 : f32
    %19 = vector.broadcast %cst_11 : f32 to vector<1x128xf32>
    %20 = arith.addf %18, %19 : vector<1x128xf32>
    %21 = math.rsqrt %20 : vector<1x128xf32>
    %22 = vector.broadcast %21 : vector<1x128xf32> to vector<64x128xf32>
    %23 = arith.mulf %13, %22 : vector<64x128xf32>
    %24 = vector.extract_strided_slice %2 {offsets = [0, 1], sizes = [64, 1], strides = [1, 1]} : vector<64x3xf32> to vector<64x1xf32>
    %25 = vector.broadcast %24 : vector<64x1xf32> to vector<64x128xf32>
    %26 = arith.mulf %23, %25 : vector<64x128xf32>
    %27 = vector.extract_strided_slice %2 {offsets = [0, 2], sizes = [64, 1], strides = [1, 1]} : vector<64x3xf32> to vector<64x1xf32>
    %28 = vector.broadcast %27 : vector<64x1xf32> to vector<64x128xf32>
    %29 = arith.addf %26, %28 : vector<64x128xf32>
    %cst_12 = arith.constant 0.000000e+00 : f32
    %30 = vector.broadcast %cst_12 : f32 to vector<64x128xf32>
    %31 = arith.maximumf %29, %30 : vector<64x128xf32>
    %32 = arith.truncf %31 : vector<64x128xf32> to vector<64x128xbf16>
    %c0_13 = arith.constant 0 : index
    %c0_14 = arith.constant 0 : index
    %33 = vector.load %arg5[%c0_13, %c0_14] : memref<32x64xbf16, #tpu.memory_space<vmem>>, vector<32x64xbf16>
    %cst_15 = arith.constant dense<0.000000e+00> : vector<32x128xf32>
    %34 = tpu.matmul %33, %32, %cst_15 {dimension_numbers = #tpu.dot_dimension_numbers<[1], [0], [0], [1], [0, 0, 1, 1], [], []>} : vector<32x64xbf16>, vector<64x128xbf16>, vector<32x128xf32> -> vector<32x128xf32>
    %c0_16 = arith.constant 0 : index
    %c0_17 = arith.constant 0 : index
    %35 = vector.load %arg6[%c0_16, %c0_17] : memref<32x4xbf16, #tpu.memory_space<vmem>>, vector<32x4xbf16>
    %cst_18 = arith.constant dense<0.000000e+00> : vector<32x128xf32>
    %36 = tpu.matmul %35, %1, %cst_18 {dimension_numbers = #tpu.dot_dimension_numbers<[1], [0], [0], [1], [0, 0, 1, 1], [], []>} : vector<32x4xbf16>, vector<4x128xbf16>, vector<32x128xf32> -> vector<32x128xf32>
    %37 = arith.addf %34, %36 : vector<32x128xf32>
    %c0_19 = arith.constant 0 : index
    %c0_20 = arith.constant 0 : index
    %38 = vector.load %arg7[%c0_19, %c0_20] : memref<32x1xf32, #tpu.memory_space<vmem>>, vector<32x1xf32>
    %39 = vector.broadcast %38 : vector<32x1xf32> to vector<32x128xf32>
    %40 = arith.addf %37, %39 : vector<32x128xf32>
    %cst_21 = arith.constant 0.000000e+00 : f32
    %41 = vector.broadcast %cst_21 : f32 to vector<32x128xf32>
    %42 = arith.maximumf %40, %41 : vector<32x128xf32>
    %c0_22 = arith.constant 0 : index
    %c0_23 = arith.constant 0 : index
    %43 = vector.load %arg8[%c0_22, %c0_23] : memref<1x32xbf16, #tpu.memory_space<vmem>>, vector<1x32xbf16>
    %44 = arith.truncf %42 : vector<32x128xf32> to vector<32x128xbf16>
    %cst_24 = arith.constant dense<0.000000e+00> : vector<1x128xf32>
    %45 = tpu.matmul %43, %44, %cst_24 {dimension_numbers = #tpu.dot_dimension_numbers<[1], [0], [0], [1], [0, 0, 1, 1], [], []>} : vector<1x32xbf16>, vector<32x128xbf16>, vector<1x128xf32> -> vector<1x128xf32>
    %c0_25 = arith.constant 0 : index
    %c0_26 = arith.constant 0 : index
    %46 = vector.load %arg9[%c0_25, %c0_26] : memref<1x1xf32, #tpu.memory_space<vmem>>, vector<1x1xf32>
    %47 = vector.broadcast %46 : vector<1x1xf32> to vector<1x128xf32>
    %48 = arith.addf %45, %47 : vector<1x128xf32>
    %c0_27 = arith.constant 0 : index
    %c0_28 = arith.constant 0 : index
    %49 = vector.load %arg10[%c0_27, %c0_28] : memref<1x128xf32, #tpu.memory_space<vmem>>, vector<1x128xf32>
    tpu.vector_store %arg10[%c0_27, %c0_28], %48 {strides = array<i32>} : memref<1x128xf32, #tpu.memory_space<vmem>>, vector<1x128xf32>,
    return
  }
  func.func @transform_0(%arg0: i32) -> (i32, i32) {
    %c0_i32 = arith.constant 0 : i32
    %c0_i32_0 = arith.constant 0 : i32
    return %c0_i32, %arg0 : i32, i32
  }
  func.func @transform_1(%arg0: i32) -> (i32, i32) {
    %c0_i32 = arith.constant 0 : i32
    %c0_i32_0 = arith.constant 0 : i32
    return %c0_i32, %arg0 : i32, i32
  }
  func.func @transform_2(%arg0: i32) -> (i32, i32) {
    %c0_i32 = arith.constant 0 : i32
    %c0_i32_0 = arith.constant 0 : i32
    %c0_i32_1 = arith.constant 0 : i32
    return %c0_i32, %c0_i32_0 : i32, i32
  }
  func.func @transform_3(%arg0: i32) -> (i32, i32) {
    %c0_i32 = arith.constant 0 : i32
    %c0_i32_0 = arith.constant 0 : i32
    %c0_i32_1 = arith.constant 0 : i32
    return %c0_i32, %c0_i32_0 : i32, i32
  }
  func.func @transform_4(%arg0: i32) -> (i32, i32) {
    %c0_i32 = arith.constant 0 : i32
    %c0_i32_0 = arith.constant 0 : i32
    %c0_i32_1 = arith.constant 0 : i32
    return %c0_i32, %c0_i32_0 : i32, i32
  }
  func.func @transform_5(%arg0: i32) -> (i32, i32) {
    %c0_i32 = arith.constant 0 : i32
    %c0_i32_0 = arith.constant 0 : i32
    %c0_i32_1 = arith.constant 0 : i32
    return %c0_i32, %c0_i32_0 : i32, i32
  }
  func.func @transform_6(%arg0: i32) -> (i32, i32) {
    %c0_i32 = arith.constant 0 : i32
    %c0_i32_0 = arith.constant 0 : i32
    %c0_i32_1 = arith.constant 0 : i32
    return %c0_i32, %c0_i32_0 : i32, i32
  }
  func.func @transform_7(%arg0: i32) -> (i32, i32) {
    %c0_i32 = arith.constant 0 : i32
    %c0_i32_0 = arith.constant 0 : i32
    %c0_i32_1 = arith.constant 0 : i32
    return %c0_i32, %c0_i32_0 : i32, i32
  }
  func.func @transform_8(%arg0: i32) -> (i32, i32) {
    %c0_i32 = arith.constant 0 : i32
    %c0_i32_0 = arith.constant 0 : i32
    %c0_i32_1 = arith.constant 0 : i32
    return %c0_i32, %c0_i32_0 : i32, i32
  }
  func.func @transform_9(%arg0: i32) -> (i32, i32) {
    %c0_i32 = arith.constant 0 : i32
    %c0_i32_0 = arith.constant 0 : i32
    return %c0_i32, %arg0 : i32, i32
  }
}

</mosaic_0001>

<llo_original>
// kernel: tpu_custom_call.1
$region0: #{tpu_custom_call.1}
  #allocation0 [shape = 'u32[]', space=smem, size = 0x4, offset = 0x4, fixed_abs, tag = 'smem constant byte address 0x4 - core index']
  #allocation1 [shape = 'u32[144,128]{1,0:T(1,128)}', space=vmem, size = 0x12000, scoped, tag = 'internal scratch']
  #allocation2 [shape = 'f32[1,1]{1,0:T(1,128)S(1)}', space=vmem, size = 0x200, scoped, tag = 'scoped memory for tpu_custom_call.1']
  %s0 = inlined_call_operand.vmem [shape: bf16[16,128], index: 0, kind: input, shape index: {}]
  %s1 = inlined_call_operand.vmem [shape: bf16[4,128], index: 1, kind: input, shape index: {}]
  %s2 = inlined_call_operand.vmem [shape: bf16[64,16], index: 2, kind: input, shape index: {}]
  %s3 = inlined_call_operand.vmem [shape: f32[64,3], index: 3, kind: input, shape index: {}]
  %s4 = inlined_call_operand.vmem [shape: bf16[32,64], index: 4, kind: input, shape index: {}]
  %s5 = inlined_call_operand.vmem [shape: bf16[32,4], index: 5, kind: input, shape index: {}]
  %s6 = inlined_call_operand.vmem [shape: f32[32,1], index: 6, kind: input, shape index: {}]
  %s7 = inlined_call_operand.vmem [shape: bf16[1,32], index: 7, kind: input, shape index: {}]
  %s8 = inlined_call_operand.<no memory space> [shape: f32[1,1], index: 8, kind: input, shape index: {}]
  %s9 = inlined_call_operand.hbm [shape: f32[1,128], index: 9, kind: output, shape index: {}]
  %s10 = sld [smem:[#allocation0]]
  $region46: #{tpu_custom_call.1} parent=0
    _
  %s12 = ssub.s32 1, %s10
  %s13 = scalar_select 0, %s12, %s10
  %v14 = vstv %s8
  %15 = vst [vmem:[#allocation2] sm:$0x1] %v14
  $region1: #{tpu_custom_call.1} parent=0
    #allocation3 [shape = 'u8[512]{0}', space=vmem, size = 0x400, scoped, tag = 'output window, operand 0, single buffered']
    #allocation4 [shape = 's32[1]{0}', space=sflag, size = 0x4, scoped, tag = 'scoped memory for tpu_custom_call.1']
    %16 = vsyncpa [#allocation4], 0
    // Predicated region
    $region2: #{tpu_custom_call.1} parent=1 // pred_check
      _
    $region3: #{tpu_custom_call.1} parent=1 // pred_check_branch
      %18 = sbr.rel (0) target = $region5
    $region4: #{tpu_custom_call.1} parent=1 // pred_region
      _
    $region5: #{tpu_custom_call.1} parent=1 // pred_fallthru
      _
    // Predicated region
    $region6: #{tpu_custom_call.1} parent=1 // pred_check
      _
    $region7: #{tpu_custom_call.1} parent=1 // pred_check_branch
      %20 = sbr.rel (0) target = $region9
    $region8: #{tpu_custom_call.1} parent=1 // pred_region
      _
    $region9: #{tpu_custom_call.1} parent=1 // pred_fallthru
      _
    // Predicated region
    $region10: #{tpu_custom_call.1} parent=1 // pred_check
      _
    $region11: #{tpu_custom_call.1} parent=1 // pred_check_branch
      %22 = sbr.rel (0) target = $region13
    $region12: #{tpu_custom_call.1} parent=1 // pred_region
      _
    $region13: #{tpu_custom_call.1} parent=1 // pred_fallthru
      _
    // Predicated region
    $region14: #{tpu_custom_call.1} parent=1 // pred_check
      _
    $region15: #{tpu_custom_call.1} parent=1 // pred_check_branch
      %24 = sbr.rel (0) target = $region17
    $region16: #{tpu_custom_call.1} parent=1 // pred_region
      _
    $region17: #{tpu_custom_call.1} parent=1 // pred_fallthru
      _
    // Predicated region
    $region18: #{tpu_custom_call.1} parent=1 // pred_check
      _
    $region19: #{tpu_custom_call.1} parent=1 // pred_check_branch
      %26 = sbr.rel (0) target = $region21
    $region20: #{tpu_custom_call.1} parent=1 // pred_region
      _
    $region21: #{tpu_custom_call.1} parent=1 // pred_fallthru
      _
    // Predicated region
    $region22: #{tpu_custom_call.1} parent=1 // pred_check
      _
    $region23: #{tpu_custom_call.1} parent=1 // pred_check_branch
      %28 = sbr.rel (0) target = $region25
    $region24: #{tpu_custom_call.1} parent=1 // pred_region
      _
    $region25: #{tpu_custom_call.1} parent=1 // pred_fallthru
      _
    // Predicated region
    $region26: #{tpu_custom_call.1} parent=1 // pred_check
      _
    $region27: #{tpu_custom_call.1} parent=1 // pred_check_branch
      %30 = sbr.rel (0) target = $region29
    $region28: #{tpu_custom_call.1} parent=1 // pred_region
      _
    $region29: #{tpu_custom_call.1} parent=1 // pred_fallthru
      _
    // Predicated region
    $region30: #{tpu_custom_call.1} parent=1 // pred_check
      _
    $region31: #{tpu_custom_call.1} parent=1 // pred_check_branch
      %32 = sbr.rel (0) target = $region33
    $region32: #{tpu_custom_call.1} parent=1 // pred_region
      _
    $region33: #{tpu_custom_call.1} parent=1 // pred_fallthru
      _
    // Predicated region
    $region34: #{tpu_custom_call.1} parent=1 // pred_check
      _
    $region35: #{tpu_custom_call.1} parent=1 // pred_check_branch
      %34 = sbr.rel (0) target = $region37
    $region36: #{tpu_custom_call.1} parent=1 // pred_region
      _
    $region37: #{tpu_custom_call.1} parent=1 // pred_fallthru
      _
    %v36 = vld [vmem:[%s0] sm:$0xf]
    %v37 = vld [vmem:[%s0 + $0x4] sm:$0xf]
    %v38 = vld [vmem:[%s1] sm:$0x3]
    %v39 = vld [vmem:[%s3] sm:$0xff]
    %v40 = vld [vmem:[%s3 + $0x8] sm:$0xff]
    %v41 = vld [vmem:[%s3 + $0x10] sm:$0xff]
    %v42 = vld [vmem:[%s3 + $0x18] sm:$0xff]
    %v43 = vld [vmem:[%s3 + $0x20] sm:$0xff]
    %v44 = vld [vmem:[%s3 + $0x28] sm:$0xff]
    %v45 = vld [vmem:[%s3 + $0x30] sm:$0xff]
    %v46 = vld [vmem:[%s3 + $0x38] sm:$0xff]
    %v47 = vld [vmem:[%s2] sm:$0xf]
    %v48 = vld [vmem:[%s2 + $0x4] sm:$0xf]
    %v49 = vld [vmem:[%s2 + $0x8] sm:$0xf]
    %v50 = vld [vmem:[%s2 + $0xc] sm:$0xf]
    %v51 = vld [vmem:[%s2 + $0x10] sm:$0xf]
    %v52 = vld [vmem:[%s2 + $0x14] sm:$0xf]
    %v53 = vld [vmem:[%s2 + $0x18] sm:$0xf]
    %v54 = vld [vmem:[%s2 + $0x1c] sm:$0xf]
    %56 = vset.pattern.permute.xlu0 0
    %57 = vperm.xlu0 %56, %v39
    %v58 = vpop.permute.xlu0 %57
    %61 = vset.pattern.permute.xlu0 0
    %62 = vperm.xlu0 %61, %v40
    %v63 = vpop.permute.xlu0 %62
    %66 = vset.pattern.permute.xlu0 0
    %67 = vperm.xlu0 %66, %v41
    %v68 = vpop.permute.xlu0 %67
    %71 = vset.pattern.permute.xlu0 0
    %72 = vperm.xlu0 %71, %v42
    %v73 = vpop.permute.xlu0 %72
    %76 = vset.pattern.permute.xlu0 0
    %77 = vperm.xlu0 %76, %v43
    %v78 = vpop.permute.xlu0 %77
    %81 = vset.pattern.permute.xlu0 0
    %82 = vperm.xlu0 %81, %v44
    %v83 = vpop.permute.xlu0 %82
    %86 = vset.pattern.permute.xlu0 0
    %87 = vperm.xlu0 %86, %v45
    %v88 = vpop.permute.xlu0 %87
    %91 = vset.pattern.permute.xlu0 0
    %92 = vperm.xlu0 %91, %v46
    %v93 = vpop.permute.xlu0 %92
    %v103 = vunpack.c.l.b16 %v47
    %v104 = vunpack.c.l.b16 %v48
    %v105 = vunpack.c.l.b16 %v49
    %v106 = vunpack.c.l.b16 %v50
    %v107 = vunpack.c.l.b16 %v51
    %v108 = vunpack.c.l.b16 %v52
    %v109 = vunpack.c.l.b16 %v53
    %v110 = vunpack.c.l.b16 %v54
    %v111 = vpack.c.b16 %v104, %v103
    %v112 = vpack.c.b16 %v106, %v105
    %v113 = vpack.c.b16 %v108, %v107
    %v114 = vpack.c.b16 %v110, %v109
    %v117 = vunpack.c.l.b16 %v36
    %v118 = vunpack.c.l.b16 %v37
    %v119 = vpack.c.b16 %v118, %v117
    %vm121 = vcmask 130048
    %v123 = vsel %vm121, %v111, 0
    %v126 = vsel %vm121, %v112, 0
    %v129 = vsel %vm121, %v113, 0
    %v132 = vsel %vm121, %v114, 0
    %134 = vmatprep.subr.bf16.mxu0 0
    %135 = vmatpush1.bf16.msra.mxu0 0
    %136 = vmatprep.subr.bf16.mxu0 0
    %137 = vmatpush1.bf16.msra.mxu0 0
    %138 = vmatprep.subr.bf16.mxu0 0
    %139 = vmatpush1.bf16.msra.mxu0 0
    %140 = vmatprep.subr.bf16.mxu0 0
    %141 = vmatpush1.bf16.msra.mxu0 0
    %142 = vmatprep.subr.bf16.mxu0 0
    %143 = vmatpush1.bf16.msra.mxu0 0
    %144 = vmatprep.subr.bf16.mxu0 0
    %145 = vmatpush1.bf16.msra.mxu0 0
    %146 = vmatprep.subr.bf16.mxu0 0
    %147 = vmatpush1.bf16.msra.mxu0 0
    %148 = vmatprep.subr.bf16.mxu0 0
    %149 = vmatpush1.bf16.msra.mxu0 %v119
    %150 = vmatprep.subr.bf16.mxu0 0
    %151 = vmatpush2.bf16.msra.mxu0 0
    %152 = vmatprep.subr.bf16.mxu0 0
    %153 = vmatpush2.bf16.msra.mxu0 0
    %154 = vmatprep.subr.bf16.mxu0 0
    %155 = vmatpush2.bf16.msra.mxu0 0
    %156 = vmatprep.subr.bf16.mxu0 0
    %157 = vmatpush2.bf16.msra.mxu0 0
    %158 = vmatprep.subr.bf16.mxu0 0
    %159 = vmatpush2.bf16.msra.mxu0 0
    %160 = vmatprep.subr.bf16.mxu0 0
    %161 = vmatpush2.bf16.msra.mxu0 0
    %162 = vmatprep.subr.bf16.mxu0 0
    %163 = vmatpush2.bf16.msra.mxu0 0
    %164 = vmatprep.subr.bf16.mxu0 0
    %165 = vmatpush2.bf16.msra.mxu0 0
    %166 = vmatprep.mubr.bf16.mxu0 0
    %167 = vmatmul.mubr.bf16.gmra.mxu0 %v123
    %v168 = vpop.f32.mrf.mxu0
    %v169 = vadd.f32 %v58, %v168
    %v170 = vpop.f32.mrf.mxu0
    %v171 = vpop.f32.mrf.mxu0
    %v172 = vadd.f32 %v63, %v171
    %v173 = vpop.f32.mrf.mxu0
    %174 = vmatprep.mubr.bf16.mxu0 0
    %175 = vmatmul.mubr.bf16.gmra.mxu0 %v126
    %v176 = vpop.f32.mrf.mxu0
    %v177 = vadd.f32 %v68, %v176
    %v178 = vpop.f32.mrf.mxu0
    %v179 = vpop.f32.mrf.mxu0
    %v180 = vadd.f32 %v73, %v179
    %v181 = vpop.f32.mrf.mxu0
    %182 = vmatprep.mubr.bf16.mxu0 0
    %183 = vmatmul.mubr.bf16.gmra.mxu0 %v129
    %v184 = vpop.f32.mrf.mxu0
    %v185 = vadd.f32 %v78, %v184
    %v186 = vpop.f32.mrf.mxu0
    %v187 = vpop.f32.mrf.mxu0
    %v188 = vadd.f32 %v83, %v187
    %v189 = vpop.f32.mrf.mxu0
    %190 = vmatprep.mubr.bf16.mxu0 0
    %191 = vmatmul.mubr.bf16.gmra.mxu0 %v132
    %v192 = vpop.f32.mrf.mxu0
    %v193 = vadd.f32 %v88, %v192
    %v194 = vpop.f32.mrf.mxu0
    %v195 = vpop.f32.mrf.mxu0
    %v196 = vadd.f32 %v93, %v195
    %v197 = vpop.f32.mrf.mxu0
    %198 = vdwg.mxu0
    %v199 = vadd.f32 %v169, %v172
    %v200 = vadd.f32 %v199, %v177
    %v201 = vadd.f32 %v200, %v180
    %v202 = vadd.f32 %v201, %v185
    %v203 = vadd.f32 %v202, %v188
    %v204 = vadd.f32 %v203, %v193
    %v205 = vadd.f32 %v204, %v196
    %v206 = vrot.slane %v205, 4
    %v207 = vadd.f32 %v205, %v206
    %v208 = vrot.slane %v207, 2
    %v209 = vadd.f32 %v207, %v208
    %v210 = vrot.slane %v209, 1
    %v211 = vadd.f32 %v209, %v210
    %v212 = vmul.f32 %v211, 0.015625
    %v213 = vsub.f32 %v169, %v212
    %v214 = vsub.f32 %v172, %v212
    %v215 = vsub.f32 %v177, %v212
    %v216 = vsub.f32 %v180, %v212
    %v217 = vsub.f32 %v185, %v212
    %v218 = vsub.f32 %v188, %v212
    %v219 = vsub.f32 %v193, %v212
    %v220 = vsub.f32 %v196, %v212
    %v221 = vmul.f32 %v213, %v213
    %v222 = vmul.f32 %v214, %v214
    %v223 = vmul.f32 %v215, %v215
    %v224 = vmul.f32 %v216, %v216
    %v225 = vmul.f32 %v217, %v217
    %v226 = vmul.f32 %v218, %v218
    %v227 = vmul.f32 %v219, %v219
    %v228 = vmul.f32 %v220, %v220
    %v229 = vadd.f32 %v221, %v222
    %v230 = vadd.f32 %v229, %v223
    %v231 = vadd.f32 %v230, %v224
    %v232 = vadd.f32 %v231, %v225
    %v233 = vadd.f32 %v232, %v226
    %v234 = vadd.f32 %v233, %v227
    %v235 = vadd.f32 %v234, %v228
    %v236 = vrot.slane %v235, 4
    %v237 = vadd.f32 %v235, %v236
    %v238 = vrot.slane %v237, 2
    %v239 = vadd.f32 %v237, %v238
    %v240 = vrot.slane %v239, 1
    %v241 = vadd.f32 %v239, %v240
    %v242 = vmul.f32 %v241, 0.015625
    %v243 = vadd.f32 %v242, 1e-05
    %v244 = vrsqrt.pop %v243
    %v245 = vmul.f32 %v213, %v244
    %v246 = vmul.f32 %v214, %v244
    %v247 = vmul.f32 %v215, %v244
    %v248 = vmul.f32 %v216, %v244
    %v249 = vmul.f32 %v217, %v244
    %v250 = vmul.f32 %v218, %v244
    %v251 = vmul.f32 %v219, %v244
    %v252 = vmul.f32 %v220, %v244
    %253 = vset.pattern.permute.xlu0 1
    %254 = vperm.xlu0 %253, %v39
    %v255 = vpop.permute.xlu0 %254
    %257 = vset.pattern.permute.xlu0 1
    %258 = vperm.xlu0 %257, %v40
    %v259 = vpop.permute.xlu0 %258
    %261 = vset.pattern.permute.xlu0 1
    %262 = vperm.xlu0 %261, %v41
    %v263 = vpop.permute.xlu0 %262
    %265 = vset.pattern.permute.xlu0 1
    %266 = vperm.xlu0 %265, %v42
    %v267 = vpop.permute.xlu0 %266
    %269 = vset.pattern.permute.xlu0 1
    %270 = vperm.xlu0 %269, %v43
    %v271 = vpop.permute.xlu0 %270
    %273 = vset.pattern.permute.xlu0 1
    %274 = vperm.xlu0 %273, %v44
    %v275 = vpop.permute.xlu0 %274
    %277 = vset.pattern.permute.xlu0 1
    %278 = vperm.xlu0 %277, %v45
    %v279 = vpop.permute.xlu0 %278
    %281 = vset.pattern.permute.xlu0 1
    %282 = vperm.xlu0 %281, %v46
    %v283 = vpop.permute.xlu0 %282
    %v285 = vmul.f32 %v245, %v255
    %v286 = vmul.f32 %v246, %v259
    %v287 = vmul.f32 %v247, %v263
    %v288 = vmul.f32 %v248, %v267
    %v289 = vmul.f32 %v249, %v271
    %v290 = vmul.f32 %v250, %v275
    %v291 = vmul.f32 %v251, %v279
    %v292 = vmul.f32 %v252, %v283
    %293 = vset.pattern.permute.xlu0 2
    %294 = vperm.xlu0 %293, %v39
    %v295 = vpop.permute.xlu0 %294
    %297 = vset.pattern.permute.xlu0 2
    %298 = vperm.xlu0 %297, %v40
    %v299 = vpop.permute.xlu0 %298
    %301 = vset.pattern.permute.xlu0 2
    %302 = vperm.xlu0 %301, %v41
    %v303 = vpop.permute.xlu0 %302
    %305 = vset.pattern.permute.xlu0 2
    %306 = vperm.xlu0 %305, %v42
    %v307 = vpop.permute.xlu0 %306
    %309 = vset.pattern.permute.xlu0 2
    %310 = vperm.xlu0 %309, %v43
    %v311 = vpop.permute.xlu0 %310
    %313 = vset.pattern.permute.xlu0 2
    %314 = vperm.xlu0 %313, %v44
    %v315 = vpop.permute.xlu0 %314
    %317 = vset.pattern.permute.xlu0 2
    %318 = vperm.xlu0 %317, %v45
    %v319 = vpop.permute.xlu0 %318
    %321 = vset.pattern.permute.xlu0 2
    %322 = vperm.xlu0 %321, %v46
    %v323 = vpop.permute.xlu0 %322
    %v325 = vadd.f32 %v285, %v295
    %v326 = vadd.f32 %v286, %v299
    %v327 = vadd.f32 %v287, %v303
    %v328 = vadd.f32 %v288, %v307
    %v329 = vadd.f32 %v289, %v311
    %v330 = vadd.f32 %v290, %v315
    %v331 = vadd.f32 %v291, %v319
    %v332 = vadd.f32 %v292, %v323
    %v333 = vmax.f32 %v325, 0.0
    %v334 = vmax.f32 %v326, 0.0
    %v335 = vmax.f32 %v327, 0.0
    %v336 = vmax.f32 %v328, 0.0
    %v337 = vmax.f32 %v329, 0.0
    %v338 = vmax.f32 %v330, 0.0
    %v339 = vmax.f32 %v331, 0.0
    %v340 = vmax.f32 %v332, 0.0
    %v341 = vpack.c.bf16 %v334, %v333
    %v342 = vpack.c.bf16 %v336, %v335
    %v343 = vpack.c.bf16 %v338, %v337
    %v344 = vpack.c.bf16 %v340, %v339
    %v345 = vld [vmem:[%s4] sm:$0xf]
    %v346 = vld [vmem:[%s4 + $0x4] sm:$0xf]
    %v347 = vld [vmem:[%s4 + $0x8] sm:$0xf]
    %v348 = vld [vmem:[%s4 + $0xc] sm:$0xf]
    %v349 = vld [vmem:[%s5] sm:$0xf]
    %v350 = vld [vmem:[%s5 + $0x4] sm:$0xf]
    %v351 = vld [vmem:[%s5 + $0x8] sm:$0xf]
    %v352 = vld [vmem:[%s5 + $0xc] sm:$0xf]
    %v357 = vunpack.c.l.b16 %v349
    %v358 = vunpack.c.l.b16 %v350
    %v359 = vunpack.c.l.b16 %v351
    %v360 = vunpack.c.l.b16 %v352
    %v361 = vpack.c.b16 %v358, %v357
    %v362 = vpack.c.b16 %v360, %v359
    %vm363 = vcmask 31744
    %v365 = vsel %vm363, %v361, 0
    %v368 = vsel %vm363, %v362, 0
    %vm370 = vcmask 1041408
    %v372 = vsel %vm370, %v38, 0
    %374 = vmatprep.subr.bf16.mxu0 0
    %375 = vmatpush1.bf16.msra.mxu0 0
    %376 = vmatprep.subr.bf16.mxu0 0
    %377 = vmatpush1.bf16.msra.mxu0 0
    %378 = vmatprep.subr.bf16.mxu0 0
    %379 = vmatpush1.bf16.msra.mxu0 0
    %380 = vmatprep.subr.bf16.mxu0 0
    %381 = vmatpush1.bf16.msra.mxu0 0
    %382 = vmatprep.subr.bf16.mxu0 0
    %383 = vmatpush1.bf16.msra.mxu0 0
    %384 = vmatprep.subr.bf16.mxu0 0
    %385 = vmatpush1.bf16.msra.mxu0 0
    %386 = vmatprep.subr.bf16.mxu0 0
    %387 = vmatpush1.bf16.msra.mxu0 0
    %388 = vmatprep.subr.bf16.mxu0 0
    %389 = vmatpush1.bf16.msra.mxu0 %v372
    %390 = vmatprep.subr.bf16.mxu0 0
    %391 = vmatpush2.bf16.msra.mxu0 0
    %392 = vmatprep.subr.bf16.mxu0 0
    %393 = vmatpush2.bf16.msra.mxu0 0
    %394 = vmatprep.subr.bf16.mxu0 0
    %395 = vmatpush2.bf16.msra.mxu0 0
    %396 = vmatprep.subr.bf16.mxu0 0
    %397 = vmatpush2.bf16.msra.mxu0 0
    %398 = vmatprep.subr.bf16.mxu0 0
    %399 = vmatpush2.bf16.msra.mxu0 0
    %400 = vmatprep.subr.bf16.mxu0 0
    %401 = vmatpush2.bf16.msra.mxu0 0
    %402 = vmatprep.subr.bf16.mxu0 0
    %403 = vmatpush2.bf16.msra.mxu0 0
    %404 = vmatprep.subr.bf16.mxu0 0
    %405 = vmatpush2.bf16.msra.mxu0 0
    %406 = vmatprep.mubr.bf16.mxu0 0
    %407 = vmatmul.mubr.bf16.gmra.mxu0 %v365
    %v408 = vpop.f32.mrf.mxu0
    %v409 = vadd.f32 0.0, %v408
    %v410 = vpop.f32.mrf.mxu0
    %v411 = vpop.f32.mrf.mxu0
    %v412 = vadd.f32 0.0, %v411
    %v413 = vpop.f32.mrf.mxu0
    %414 = vmatprep.mubr.bf16.mxu0 0
    %415 = vmatmul.mubr.bf16.gmra.mxu0 %v368
    %v416 = vpop.f32.mrf.mxu0
    %v417 = vadd.f32 0.0, %v416
    %v418 = vpop.f32.mrf.mxu0
    %v419 = vpop.f32.mrf.mxu0
    %v420 = vadd.f32 0.0, %v419
    %v421 = vpop.f32.mrf.mxu0
    %422 = vdwg.mxu0
    %v427 = vunpack.c.l.b16 %v345
    %v428 = vunpack.c.l.b16 %v346
    %v429 = vunpack.c.l.b16 %v347
    %v430 = vunpack.c.l.b16 %v348
    %v431 = vpack.c.b16 %v428, %v427
    %v432 = vpack.c.b16 %v430, %v429
    %vm433 = vcmask 523264
    %v435 = vsel %vm433, %v431, 0
    %v438 = vsel %vm433, %v432, 0
    %440 = vmatprep.subr.bf16.mxu0 0
    %441 = vmatpush1.bf16.msra.mxu0 0
    %442 = vmatprep.subr.bf16.mxu0 0
    %443 = vmatpush1.bf16.msra.mxu0 0
    %444 = vmatprep.subr.bf16.mxu0 0
    %445 = vmatpush1.bf16.msra.mxu0 0
    %446 = vmatprep.subr.bf16.mxu0 0
    %447 = vmatpush1.bf16.msra.mxu0 0
    %448 = vmatprep.subr.bf16.mxu0 0
    %449 = vmatpush1.bf16.msra.mxu0 %v344
    %450 = vmatprep.subr.bf16.mxu0 0
    %451 = vmatpush1.bf16.msra.mxu0 %v343
    %452 = vmatprep.subr.bf16.mxu0 0
    %453 = vmatpush1.bf16.msra.mxu0 %v342
    %454 = vmatprep.subr.bf16.mxu0 0
    %455 = vmatpush1.bf16.msra.mxu0 %v341
    %456 = vmatprep.subr.bf16.mxu0 0
    %457 = vmatpush2.bf16.msra.mxu0 0
    %458 = vmatprep.subr.bf16.mxu0 0
    %459 = vmatpush2.bf16.msra.mxu0 0
    %460 = vmatprep.subr.bf16.mxu0 0
    %461 = vmatpush2.bf16.msra.mxu0 0
    %462 = vmatprep.subr.bf16.mxu0 0
    %463 = vmatpush2.bf16.msra.mxu0 0
    %464 = vmatprep.subr.bf16.mxu0 0
    %465 = vmatpush2.bf16.msra.mxu0 0
    %466 = vmatprep.subr.bf16.mxu0 0
    %467 = vmatpush2.bf16.msra.mxu0 0
    %468 = vmatprep.subr.bf16.mxu0 0
    %469 = vmatpush2.bf16.msra.mxu0 0
    %470 = vmatprep.subr.bf16.mxu0 0
    %471 = vmatpush2.bf16.msra.mxu0 0
    %472 = vmatprep.mubr.bf16.mxu0 0
    %473 = vmatmul.mubr.bf16.gmra.mxu0 %v435
    %v474 = vpop.f32.mrf.mxu0
    %v475 = vadd.f32 %v409, %v474
    %v476 = vpop.f32.mrf.mxu0
    %v477 = vpop.f32.mrf.mxu0
    %v478 = vadd.f32 %v412, %v477
    %v479 = vpop.f32.mrf.mxu0
    %480 = vmatprep.mubr.bf16.mxu0 0
    %481 = vmatmul.mubr.bf16.gmra.mxu0 %v438
    %v482 = vpop.f32.mrf.mxu0
    %v483 = vadd.f32 %v417, %v482
    %v484 = vpop.f32.mrf.mxu0
    %v485 = vpop.f32.mrf.mxu0
    %v486 = vadd.f32 %v420, %v485
    %v487 = vpop.f32.mrf.mxu0
    %488 = vdwg.mxu0
    %v489 = vld [vmem:[%s6] sm:$0xff]
    %v490 = vld [vmem:[%s6 + $0x8] sm:$0xff]
    %v491 = vld [vmem:[%s6 + $0x10] sm:$0xff]
    %v492 = vld [vmem:[%s6 + $0x18] sm:$0xff]
    %494 = vset.pattern.permute.xlu0 0
    %495 = vperm.xlu0 %494, %v489
    %v496 = vpop.permute.xlu0 %495
    %499 = vset.pattern.permute.xlu0 0
    %500 = vperm.xlu0 %499, %v490
    %v501 = vpop.permute.xlu0 %500
    %504 = vset.pattern.permute.xlu0 0
    %505 = vperm.xlu0 %504, %v491
    %v506 = vpop.permute.xlu0 %505
    %509 = vset.pattern.permute.xlu0 0
    %510 = vperm.xlu0 %509, %v492
    %v511 = vpop.permute.xlu0 %510
    %v513 = vadd.f32 %v475, %v496
    %v514 = vadd.f32 %v478, %v501
    %v515 = vadd.f32 %v483, %v506
    %v516 = vadd.f32 %v486, %v511
    %v517 = vmax.f32 %v513, 0.0
    %v518 = vmax.f32 %v514, 0.0
    %v519 = vmax.f32 %v515, 0.0
    %v520 = vmax.f32 %v516, 0.0
    %v521 = vld [vmem:[%s7] sm:$0x1]
    %v522 = vpack.c.bf16 %v518, %v517
    %v523 = vpack.c.bf16 %v520, %v519
    %v524 = vld [vmem:[#allocation2] sm:$0x1]
    %526 = vset.pattern.permute.xlu0 0
    %527 = vperm.xlu0 %526, %v524
    %v528 = vpop.permute.xlu0 %527
    %v530 = vlaneseq
    %v531 = vshrl.u32 %v530, 7
    %v532 = vsub.s32 0, %v531
    %v533 = vrot.slane %v528, %v532
    %vm534 = vcmask 261120
    %v536 = vsel %vm534, %v521, 0
    %538 = vmatprep.subr.bf16.mxu0 0
    %539 = vmatpush1.bf16.msra.mxu0 0
    %540 = vmatprep.subr.bf16.mxu0 0
    %541 = vmatpush1.bf16.msra.mxu0 0
    %542 = vmatprep.subr.bf16.mxu0 0
    %543 = vmatpush1.bf16.msra.mxu0 0
    %544 = vmatprep.subr.bf16.mxu0 0
    %545 = vmatpush1.bf16.msra.mxu0 0
    %546 = vmatprep.subr.bf16.mxu0 0
    %547 = vmatpush1.bf16.msra.mxu0 0
    %548 = vmatprep.subr.bf16.mxu0 0
    %549 = vmatpush1.bf16.msra.mxu0 0
    %550 = vmatprep.subr.bf16.mxu0 0
    %551 = vmatpush1.bf16.msra.mxu0 %v523
    %552 = vmatprep.subr.bf16.mxu0 0
    %553 = vmatpush1.bf16.msra.mxu0 %v522
    %554 = vmatprep.subr.bf16.mxu0 0
    %555 = vmatpush2.bf16.msra.mxu0 0
    %556 = vmatprep.subr.bf16.mxu0 0
    %557 = vmatpush2.bf16.msra.mxu0 0
    %558 = vmatprep.subr.bf16.mxu0 0
    %559 = vmatpush2.bf16.msra.mxu0 0
    %560 = vmatprep.subr.bf16.mxu0 0
    %561 = vmatpush2.bf16.msra.mxu0 0
    %562 = vmatprep.subr.bf16.mxu0 0
    %563 = vmatpush2.bf16.msra.mxu0 0
    %564 = vmatprep.subr.bf16.mxu0 0
    %565 = vmatpush2.bf16.msra.mxu0 0
    %566 = vmatprep.subr.bf16.mxu0 0
    %567 = vmatpush2.bf16.msra.mxu0 0
    %568 = vmatprep.subr.bf16.mxu0 0
    %569 = vmatpush2.bf16.msra.mxu0 0
    %570 = vmatprep.mubr.bf16.mxu0 0
    %571 = vmatmul.mubr.bf16.gmra.mxu0 %v536
    %v572 = vpop.f32.mrf.mxu0
    %v573 = vadd.f32 %v533, %v572
    %v574 = vpop.f32.mrf.mxu0
    %v575 = vpop.f32.mrf.mxu0
    %v576 = vpop.f32.mrf.mxu0
    %577 = vdwg.mxu0
    %578 = vst [vmem:[#allocation3] sm:$0x1] %v573
    // Predicated region
    $region38: #{tpu_custom_call.1} parent=1 // pred_check
      _
    $region39: #{tpu_custom_call.1} parent=1 // pred_check_branch
      %580 = sbr.rel (0) target = $region41
    $region40: #{tpu_custom_call.1} parent=1 // pred_region
      %s582 = ssub.s32 16, 16
      %583 = vsyncadd [#allocation4], %s582
      %s585 = sshll.u32 [#allocation3], 4
      %s586 = int_to_ptr.vmem [resolvable:$true] %s585
      %588 = dma.vmem_to_hbm [thread:$0]  %s586, 16, %s9, [#allocation4]
    $region41: #{tpu_custom_call.1} parent=1 // pred_fallthru
      _
    // Predicated region
    $region42: #{tpu_custom_call.1} parent=1 // pred_check
      _
    $region43: #{tpu_custom_call.1} parent=1 // pred_check_branch
      %590 = sbr.rel (0) target = $region45
    $region44: #{tpu_custom_call.1} parent=1 // pred_region
      %591 = dma.done [#allocation4], 16
    $region45: #{tpu_custom_call.1} parent=1 // pred_fallthru
      _
    %592 = vsyncpa [#allocation4], 1

</llo_original>
